<compile_context>
chip_gen: v5e
topology: v5e:2x2
jax: 0.10.0
libtpu: 0.0.40
codegen_flags: <defaults>
</compile_context>

<pallas_src>
import functools
import math

import jax
import jax.numpy as jnp
from jax.experimental import pallas as pl
from jax.experimental.pallas import tpu as pltpu

_SQRT_2_OVER_PI = math.sqrt(2.0 / math.pi)


def _round_up(x, m):
    return -(-x // m) * m


def _gelu_ln_epilogue(y, g, beta, eps, o_ref):
    """tanh-GELU + LayerNorm over the feature dim, f32 math, single store."""
    # gelu(y) = 0.5*y*(1 + tanh(sqrt(2/pi)*(y + 0.044715*y^3))); inner term factored.
    inner = y * (1.0 + 0.044715 * (y * y))
    y = 0.5 * y * (1.0 + jnp.tanh(_SQRT_2_OVER_PI * inner))
    # TODO(synk): dropout omitted — inference semantics (identity), matching model.eval().
    mu = jnp.mean(y, axis=-1, keepdims=True)
    var = jnp.mean(y * y, axis=-1, keepdims=True) - mu * mu          # one-pass variance
    o_ref[...] = ((y - mu) * jax.lax.rsqrt(var + eps) * g + beta).astype(o_ref.dtype)


def _fused_kernel(x_ref, w_ref, b_ref, g_ref, beta_ref, o_ref, *, eps):
    # Whole weight VMEM-resident: one MXU dot per row tile, then the epilogue.
    y = jnp.dot(x_ref[...].astype(jnp.bfloat16), w_ref[...],
                preferred_element_type=jnp.float32) + b_ref[...]
    _gelu_ln_epilogue(y, g_ref[...], beta_ref[...], eps, o_ref)


def _fused_kernel_ktiled(x_ref, w_ref, b_ref, g_ref, beta_ref, o_ref, acc_ref, *, eps):
    # K (Din) streamed in (tk, Dout) weight blocks; f32 accumulator scratch.
    k = pl.program_id(1)

    @pl.when(k == 0)
    def _():
        acc_ref[...] = jnp.zeros_like(acc_ref)

    acc_ref[...] += jnp.dot(x_ref[...].astype(jnp.bfloat16), w_ref[...],
                            preferred_element_type=jnp.float32)

    @pl.when(k == pl.num_programs(1) - 1)
    def _():
        _gelu_ln_epilogue(acc_ref[...] + b_ref[...], g_ref[...], beta_ref[...],
                          eps, o_ref)


def transform_input_dimensionality(x, w, b, gamma, beta, *, eps=1e-5,
                                   block_rows=512, out_dtype=None,
                                   force_k_tile=None):
    """Fused LayerNorm(gelu(x @ w + b)).

    x: (..., Din) float32 or bfloat16 (no wrapper cast is inserted).
    w: (Din, Dout) — input-major layout, i.e. the TRANSPOSE of PyTorch nn.Linear.weight.
    b, gamma, beta: (Dout,).
    out_dtype: output dtype (defaults to x.dtype); pass jnp.bfloat16 to halve store traffic.
    Precision contract: the matmul runs with bf16 operands and f32 accumulation on the MXU.
    """
    Din, Dout = w.shape
    lead = x.shape[:-1]
    rows = 1
    for d in lead:
        rows *= d
    x2 = x.reshape(rows, Din)

    out_dtype = x.dtype if out_dtype is None else out_dtype
    x_sz = jnp.dtype(x.dtype).itemsize
    o_sz = jnp.dtype(out_dtype).itemsize

    # --- VMEM budget (per generation) ---------------------------------------
    try:
        vmem_cap = int(pltpu.get_tpu_info().vmem_capacity_bytes)
    except Exception:
        vmem_cap = 64 * 1024 * 1024          # conservative (v7x per-TC VMEM)
    budget = int(vmem_cap * 0.6)             # tile-sizing budget with headroom

    # --- K (Din) tiling: only when the resident bf16 weight would eat VMEM ---
    if force_k_tile is not None:
        tk = int(force_k_tile)
        if Din % tk != 0:
            raise ValueError("force_k_tile must divide Din")
    elif Din * Dout * 2 <= budget // 3:
        tk = Din                              # whole weight stays VMEM-resident
    else:
        tk = min(((budget // 3) // (2 * Dout * 2)) // 128 * 128, (Din // 128) * 128)
        while tk >= 128 and Din % tk != 0:
            tk -= 128
        if tk < 128:
            tk = Din   # TODO(synk): Din not a 128-multiple — fall back to whole-K residency
    nk = Din // tk

    # --- Row tile: sublane-aligned, as big as the VMEM budget allows ---------
    w_buf = 1 if nk == 1 else 2               # Buffered(1) when weight index is constant
    fixed = w_buf * tk * Dout * 2 + 3 * Dout * 4
    per_row = (2 * tk * x_sz                  # x double-buffer
               + 2 * Dout * o_sz              # output double-buffer
               + (Dout * 4 if nk > 1 else 0)  # f32 accumulator scratch
               + 4 * Dout * 4)                # epilogue temporaries headroom
    avail_rows = max(8, (budget - fixed) // per_row)
    tm = min(block_rows, avail_rows, _round_up(rows, 8))
    if 8 < rows <= 2 * block_rows:
        # >= 2 grid steps so the "parallel" axis can occupy both TCs on dual-TC chips.
        tm = min(tm, _round_up(-(-rows // 2), 8))
    tm = max(8, (tm // 8) * 8)

    nrt = pl.cdiv(rows, tm)                   # ragged last block -> masked stores

    # --- VMEM limit: actual footprint + headroom, capped at 75% of physical ---
    need = (2 * tm * tk * x_sz + w_buf * tk * Dout * 2 + 2 * tm * Dout * o_sz
            + (tm * Dout * 4 if nk > 1 else 0) + 3 * Dout * 4 + 4 * tm * Dout * 4)
    vmem_limit = min(int(vmem_cap * 0.75), max(int(need * 1.3), 32 * 1024 * 1024))

    w_bf16 = w.astype(jnp.bfloat16)           # half the weight DMA / VMEM footprint
    b2 = b.reshape(1, Dout).astype(jnp.float32)
    g2 = gamma.reshape(1, Dout).astype(jnp.float32)
    be2 = beta.reshape(1, Dout).astype(jnp.float32)

    if nk == 1:
        kern = functools.partial(_fused_kernel, eps=eps)
        grid = (nrt,)
        in_specs = [
            pl.BlockSpec((tm, Din), lambda i: (i, 0)),
            pl.BlockSpec((Din, Dout), lambda i: (0, 0), pipeline_mode=pl.Buffered(1)),
            pl.BlockSpec((1, Dout), lambda i: (0, 0), pipeline_mode=pl.Buffered(1)),
            pl.BlockSpec((1, Dout), lambda i: (0, 0), pipeline_mode=pl.Buffered(1)),
            pl.BlockSpec((1, Dout), lambda i: (0, 0), pipeline_mode=pl.Buffered(1)),
        ]
        out_specs = pl.BlockSpec((tm, Dout), lambda i: (i, 0))
        scratch_shapes = []
        dims = ("parallel",)
    else:
        kern = functools.partial(_fused_kernel_ktiled, eps=eps)
        grid = (nrt, nk)                       # reduction (K) axis last
        in_specs = [
            pl.BlockSpec((tm, tk), lambda i, k: (i, k)),
            pl.BlockSpec((tk, Dout), lambda i, k: (k, 0)),   # streamed, double-buffered
            pl.BlockSpec((1, Dout), lambda i, k: (0, 0), pipeline_mode=pl.Buffered(1)),
            pl.BlockSpec((1, Dout), lambda i, k: (0, 0), pipeline_mode=pl.Buffered(1)),
            pl.BlockSpec((1, Dout), lambda i, k: (0, 0), pipeline_mode=pl.Buffered(1)),
        ]
        out_specs = pl.BlockSpec((tm, Dout), lambda i, k: (i, 0))
        scratch_shapes = [pltpu.VMEM((tm, Dout), jnp.float32)]
        dims = ("parallel", "arbitrary")

    out = pl.pallas_call(
        kern,
        out_shape=jax.ShapeDtypeStruct((rows, Dout), out_dtype),
        grid=grid,
        in_specs=in_specs,
        out_specs=out_specs,
        scratch_shapes=scratch_shapes,
        compiler_params=pltpu.CompilerParams(
            dimension_semantics=dims,
            vmem_limit_bytes=vmem_limit,
        ),
    )(x2, w_bf16, b2, g2, be2)

    return out.reshape(*lead, Dout)


if __name__ == "__main__":
    # Small shapes consistent with the module: (batch, seq, source_dim) -> (batch, seq, target_dim).
    # Lane-dense feature dims (multiples of 128; 256 to fill v6e/v7x MXU tiles).
    B, S = 2, 8
    Din, Dout = 256, 256

    key = jax.random.PRNGKey(0)
    kx, kw, kb = jax.random.split(key, 3)
    x = jax.random.normal(kx, (B, S, Din), jnp.float32)
    w = jax.random.normal(kw, (Din, Dout), jnp.float32) * (1.0 / math.sqrt(Din))
    b = jax.random.normal(kb, (Dout,), jnp.float32) * 0.02
    gamma = jnp.ones((Dout,), jnp.float32)
    beta = jnp.zeros((Dout,), jnp.float32)

    # Pure-JAX f32 reference (rows are independent, so slices of it are also references).
    y_ref = x @ w + b
    y_ref = 0.5 * y_ref * (1.0 + jnp.tanh(_SQRT_2_OVER_PI * (y_ref + 0.044715 * y_ref ** 3)))
    mu = jnp.mean(y_ref, axis=-1, keepdims=True)
    var = jnp.mean((y_ref - mu) ** 2, axis=-1, keepdims=True)
    ref = (y_ref - mu) * jax.lax.rsqrt(var + 1e-5) * gamma + beta

    # 1) Whole-weight-resident path (the common case).
    out = transform_input_dimensionality(x, w, b, gamma, beta)
    jax.block_until_ready(out)
    assert out.shape == (B, S, Dout)
    assert bool(jnp.all(jnp.isfinite(out)))
    assert bool(jnp.allclose(out, ref, atol=1e-1, rtol=1e-1))

    # 2) K-streamed path (accumulator + pl.when epilogue), forced for testing.
    out_k = transform_input_dimensionality(x, w, b, gamma, beta, force_k_tile=128)
    jax.block_until_ready(out_k)
    assert bool(jnp.allclose(out_k, ref, atol=1e-1, rtol=1e-1))

    # 3) Ragged row count (rows = 14): no wrapper pad/slice; masked tail stores.
    out_r = transform_input_dimensionality(x[:, :7, :], w, b, gamma, beta)
    jax.block_until_ready(out_r)
    assert out_r.shape == (B, 7, Dout)
    assert bool(jnp.allclose(out_r, ref[:, :7, :], atol=1e-1, rtol=1e-1))

    print("KERNEL_OK")
</pallas_src>

<mosaic_0001>
module attributes {stable_mosaic.version = 11 : i64} {
  func.func @_fused_kernel(%arg0: i32, %arg1: memref<8x256xf32, #tpu.memory_space<vmem>>, %arg2: memref<256x256xbf16, #tpu.memory_space<vmem>>, %arg3: memref<1x256xf32, #tpu.memory_space<vmem>>, %arg4: memref<1x256xf32, #tpu.memory_space<vmem>>, %arg5: memref<1x256xf32, #tpu.memory_space<vmem>>, %arg6: memref<8x256xf32, #tpu.memory_space<vmem>>) attributes {dimension_semantics = [#tpu.dimension_semantics<parallel>], iteration_bounds = array<i64: 2>, scalar_prefetch = 0 : i64, scratch_operands = 0 : i64, tpu.core_type = #tpu.core_type<tc>, window_params = [{transform_indices = @transform_0, window_bounds = array<i64: 8, 256>}, {pipeline_mode = #tpu.pipeline_mode<synchronous>, transform_indices = @transform_1, window_bounds = array<i64: 256, 256>}, {pipeline_mode = #tpu.pipeline_mode<synchronous>, transform_indices = @transform_2, window_bounds = array<i64: 1, 256>}, {pipeline_mode = #tpu.pipeline_mode<synchronous>, transform_indices = @transform_3, window_bounds = array<i64: 1, 256>}, {pipeline_mode = #tpu.pipeline_mode<synchronous>, transform_indices = @transform_4, window_bounds = array<i64: 1, 256>}, {transform_indices = @transform_5, window_bounds = array<i64: 8, 256>}]} {
    %c0 = arith.constant 0 : index
    %c0_0 = arith.constant 0 : index
    %0 = vector.load %arg1[%c0, %c0_0] : memref<8x256xf32, #tpu.memory_space<vmem>>, vector<8x256xf32>
    %1 = arith.truncf %0 : vector<8x256xf32> to vector<8x256xbf16>
    %c0_1 = arith.constant 0 : index
    %c0_2 = arith.constant 0 : index
    %2 = vector.load %arg2[%c0_1, %c0_2] : memref<256x256xbf16, #tpu.memory_space<vmem>>, vector<256x256xbf16>
    %cst = arith.constant dense<0.000000e+00> : vector<8x256xf32>
    %3 = tpu.matmul %1, %2, %cst {dimension_numbers = #tpu.dot_dimension_numbers<[1], [0], [0], [1], [0, 0, 1, 1], [], []>} : vector<8x256xbf16>, vector<256x256xbf16>, vector<8x256xf32> -> vector<8x256xf32>
    %c0_3 = arith.constant 0 : index
    %c0_4 = arith.constant 0 : index
    %4 = vector.load %arg3[%c0_3, %c0_4] : memref<1x256xf32, #tpu.memory_space<vmem>>, vector<1x256xf32>
    %5 = vector.broadcast %4 : vector<1x256xf32> to vector<8x256xf32>
    %6 = arith.addf %3, %5 : vector<8x256xf32>
    %c0_5 = arith.constant 0 : index
    %c0_6 = arith.constant 0 : index
    %7 = vector.load %arg4[%c0_5, %c0_6] : memref<1x256xf32, #tpu.memory_space<vmem>>, vector<1x256xf32>
    %c0_7 = arith.constant 0 : index
    %c0_8 = arith.constant 0 : index
    %8 = vector.load %arg5[%c0_7, %c0_8] : memref<1x256xf32, #tpu.memory_space<vmem>>, vector<1x256xf32>
    %9 = arith.mulf %6, %6 : vector<8x256xf32>
    %cst_9 = arith.constant 4.471500e-02 : f32
    %10 = vector.broadcast %cst_9 : f32 to vector<8x256xf32>
    %11 = arith.mulf %10, %9 : vector<8x256xf32>
    %cst_10 = arith.constant 1.000000e+00 : f32
    %12 = vector.broadcast %cst_10 : f32 to vector<8x256xf32>
    %13 = arith.addf %12, %11 : vector<8x256xf32>
    %14 = arith.mulf %6, %13 : vector<8x256xf32>
    %cst_11 = arith.constant 5.000000e-01 : f32
    %15 = vector.broadcast %cst_11 : f32 to vector<8x256xf32>
    %16 = arith.mulf %15, %6 : vector<8x256xf32>
    %cst_12 = arith.constant 0.797884583 : f32
    %17 = vector.broadcast %cst_12 : f32 to vector<8x256xf32>
    %18 = arith.mulf %17, %14 : vector<8x256xf32>
    %19 = math.tanh %18 : vector<8x256xf32>
    %cst_13 = arith.constant 1.000000e+00 : f32
    %20 = vector.broadcast %cst_13 : f32 to vector<8x256xf32>
    %21 = arith.addf %20, %19 : vector<8x256xf32>
    %22 = arith.mulf %16, %21 : vector<8x256xf32>
    %cst_14 = arith.constant dense<0.000000e+00> : vector<8xf32>
    %23 = vector.multi_reduction <add>, %22, %cst_14 [1] : vector<8x256xf32> to vector<8xf32>
    %24 = vector.shape_cast %23 : vector<8xf32> to vector<8x1xf32>
    %cst_15 = arith.constant 2.560000e+02 : f32
    %25 = vector.broadcast %cst_15 : f32 to vector<8x1xf32>
    %26 = arith.divf %24, %25 : vector<8x1xf32>
    %27 = arith.mulf %22, %22 : vector<8x256xf32>
    %cst_16 = arith.constant dense<0.000000e+00> : vector<8xf32>
    %28 = vector.multi_reduction <add>, %27, %cst_16 [1] : vector<8x256xf32> to vector<8xf32>
    %29 = vector.shape_cast %28 : vector<8xf32> to vector<8x1xf32>
    %cst_17 = arith.constant 2.560000e+02 : f32
    %30 = vector.broadcast %cst_17 : f32 to vector<8x1xf32>
    %31 = arith.divf %29, %30 : vector<8x1xf32>
    %32 = arith.mulf %26, %26 : vector<8x1xf32>
    %33 = arith.subf %31, %32 : vector<8x1xf32>
    %34 = vector.broadcast %26 : vector<8x1xf32> to vector<8x256xf32>
    %35 = arith.subf %22, %34 : vector<8x256xf32>
    %cst_18 = arith.constant 9.99999974E-6 : f32
    %36 = vector.broadcast %cst_18 : f32 to vector<8x1xf32>
    %37 = arith.addf %33, %36 : vector<8x1xf32>
    %38 = math.rsqrt %37 : vector<8x1xf32>
    %39 = vector.broadcast %38 : vector<8x1xf32> to vector<8x256xf32>
    %40 = arith.mulf %35, %39 : vector<8x256xf32>
    %41 = vector.broadcast %7 : vector<1x256xf32> to vector<8x256xf32>
    %42 = arith.mulf %40, %41 : vector<8x256xf32>
    %43 = vector.broadcast %8 : vector<1x256xf32> to vector<8x256xf32>
    %44 = arith.addf %42, %43 : vector<8x256xf32>
    %c0_19 = arith.constant 0 : index
    %c0_20 = arith.constant 0 : index
    %45 = vector.load %arg6[%c0_19, %c0_20] : memref<8x256xf32, #tpu.memory_space<vmem>>, vector<8x256xf32>
    tpu.vector_store %arg6[%c0_19, %c0_20], %44 {strides = array<i32>} : memref<8x256xf32, #tpu.memory_space<vmem>>, vector<8x256xf32>,
    return
  }
  func.func @transform_0(%arg0: i32) -> (i32, i32) {
    %c0_i32 = arith.constant 0 : i32
    %c0_i32_0 = arith.constant 0 : i32
    return %arg0, %c0_i32 : i32, i32
  }
  func.func @transform_1(%arg0: i32) -> (i32, i32) {
    %c0_i32 = arith.constant 0 : i32
    %c0_i32_0 = arith.constant 0 : i32
    %c0_i32_1 = arith.constant 0 : i32
    return %c0_i32, %c0_i32_0 : i32, i32
  }
  func.func @transform_2(%arg0: i32) -> (i32, i32) {
    %c0_i32 = arith.constant 0 : i32
    %c0_i32_0 = arith.constant 0 : i32
    %c0_i32_1 = arith.constant 0 : i32
    return %c0_i32, %c0_i32_0 : i32, i32
  }
  func.func @transform_3(%arg0: i32) -> (i32, i32) {
    %c0_i32 = arith.constant 0 : i32
    %c0_i32_0 = arith.constant 0 : i32
    %c0_i32_1 = arith.constant 0 : i32
    return %c0_i32, %c0_i32_0 : i32, i32
  }
  func.func @transform_4(%arg0: i32) -> (i32, i32) {
    %c0_i32 = arith.constant 0 : i32
    %c0_i32_0 = arith.constant 0 : i32
    %c0_i32_1 = arith.constant 0 : i32
    return %c0_i32, %c0_i32_0 : i32, i32
  }
  func.func @transform_5(%arg0: i32) -> (i32, i32) {
    %c0_i32 = arith.constant 0 : i32
    %c0_i32_0 = arith.constant 0 : i32
    return %arg0, %c0_i32 : i32, i32
  }
}

</mosaic_0001>

<llo_original>
// kernel: tpu_custom_call.1
$region0: #{tpu_custom_call.1}
  #allocation0 [shape = 'u32[]', space=smem, size = 0x4, offset = 0x4, fixed_abs, tag = 'smem constant byte address 0x4 - core index']
  #allocation1 [shape = 'u32[72,128]{1,0:T(1,128)}', space=vmem, size = 0x9000, scoped, tag = 'internal scratch']
  %s0 = inlined_call_operand.hbm [shape: f32[16,256], index: 0, kind: input, shape index: {}]
  %s1 = inlined_call_operand.hbm [shape: bf16[256,256], index: 1, kind: input, shape index: {}]
  %s2 = inlined_call_operand.hbm [shape: f32[1,256], index: 2, kind: input, shape index: {}]
  %s3 = inlined_call_operand.vmem [shape: f32[1,256], index: 3, kind: input, shape index: {}]
  %s4 = inlined_call_operand.hbm [shape: f32[1,256], index: 4, kind: input, shape index: {}]
  %s5 = inlined_call_operand.hbm [shape: f32[16,256], index: 5, kind: output, shape index: {}]
  %s6 = sld [smem:[#allocation0]]
  $region69: #{tpu_custom_call.1} parent=0
    _
  %s8 = ssub.s32 1, %s6
  %s9 = scalar_select 0, %s8, %s6
  $region1: #{tpu_custom_call.1} parent=0
    #allocation2 [shape = 'u8[16384]{0}', space=vmem, size = 0x4000, scoped, tag = 'input window, operand 0']
    #allocation3 [shape = 's32[2]{0}', space=sflag, size = 0x8, scoped, tag = 'scoped memory for tpu_custom_call.1']
    #allocation4 [shape = 's32[2]{0}', space=sflag, size = 0x8, scoped, tag = 'scoped memory for tpu_custom_call.1']
    #allocation5 [shape = 'u8[131072]{0}', space=vmem, size = 0x20000, scoped, tag = 'input window, operand 1, single buffered']
    #allocation6 [shape = 's32[1]{0}', space=sflag, size = 0x4, scoped, tag = 'scoped memory for tpu_custom_call.1']
    #allocation7 [shape = 'u8[1024]{0}', space=vmem, size = 0x400, scoped, tag = 'input window, operand 2, single buffered']
    #allocation8 [shape = 'u8[1024]{0}', space=vmem, size = 0x400, scoped, tag = 'input window, operand 4, single buffered']
    #allocation9 [shape = 's32[1]{0}', space=sflag, size = 0x4, scoped, tag = 'scoped memory for tpu_custom_call.1']
    #allocation10 [shape = 'u8[16384]{0}', space=vmem, size = 0x4000, scoped, tag = 'output window, operand 0']
    %10 = vsyncpa [#allocation3], 0
    %s11 = scalar_lea.sflag [#allocation3], 1
    %12 = vsyncpa %s11, 0
    %13 = vsyncpa [#allocation6], 0
    %14 = vsyncpa [#allocation9], 0
    %15 = vsyncpa [#allocation4], 0
    %s16 = scalar_lea.sflag [#allocation4], 1
    %17 = vsyncpa %s16, 0
    loop: start=0, step=1, limit=4
    $region2: #{tpu_custom_call.1} parent=1 // loop_pre_header
      _
    $region3: #{tpu_custom_call.1} parent=1 // loop_header
      %s19 = sphi 0, %s23
      %p20 = scmp.ge.s32.totalorder %s19, 4
      %s29 = sphi 0, %s31
      %s32 = sphi 0, %s29
      %s33 = sphi 0, %s32
      %s49 = sphi 0, %s33
      %s53 = sphi 0, %s53
      %s55 = sphi 0, %s53
      %s56 = sphi 0, %s55
      %s70 = sphi 0, %s56
      %s74 = sphi 0, %s74
      %s76 = sphi 0, %s74
      %s77 = sphi 0, %s76
      %s91 = sphi 0, %s77
      %s95 = sphi 0, %s95
      %s97 = sphi 0, %s95
      %s98 = sphi 0, %s97
      %s112 = sphi 0, %s98
      %s116 = sphi 0, %s116
      %s118 = sphi 0, %s116
      %s119 = sphi 0, %s118
      %s133 = sphi 0, %s119
      %s139 = sphi 0, %s141
      %s142 = sphi 0, %s139
      %s143 = sphi 0, %s142
      %s159 = sphi 0, %s143
    $region4: #{tpu_custom_call.1} parent=1 // loop_header_branch
      %22 = sbr.rel (%p20) target = $region8
    $region5: #{tpu_custom_call.1} parent=1 // loop_body
      %s24 = ssub.s32 %s19, 1
      %s25 = ssub.s32 %s19, 2
      %s26 = sadd.s32 %s19, 1
      %s27 = ssub.s32 %s19, %s26
      %p28 = scmp.eq.s32.totalorder %s27, 0
      %s30 = sadd.s32 %s29, 1
      %s31 = scalar_select %p28, %s29, %s30
      %p34 = pneg %p28
      %p35 = scmp.eq.s32.totalorder %s19, 1
      %p36 = por %p34, %p35
      %p37 = scmp.ne.s32.totalorder %s29, %s32
      %p38 = scmp.eq.s32.totalorder %s19, 0
      %p39 = por %p37, %p38
      %p40 = scmp.ne.s32.totalorder %s29, %s32
      %p41 = scmp.eq.s32.totalorder %s24, 1
      %p42 = por %p40, %p41
      %p43 = scmp.ne.s32.totalorder %s32, %s33
      %p44 = scmp.eq.s32.totalorder %s24, 0
      %p45 = por %p43, %p44
      %p46 = scmp.ne.s32.totalorder %s32, %s33
      %p47 = scmp.eq.s32.totalorder %s25, 1
      %p48 = por %p46, %p47
      %p50 = scmp.ne.s32.totalorder %s33, %s49
      %p51 = scmp.eq.s32.totalorder %s25, 0
      %p52 = por %p50, %p51
      %s54 = sadd.s32 %s53, 1
      %p57 = scmp.eq.s32.totalorder %s19, 1
      %p58 = scmp.ne.s32.totalorder %s53, %s55
      %p59 = scmp.eq.s32.totalorder %s19, 0
      %p60 = por %p58, %p59
      %p61 = scmp.ne.s32.totalorder %s53, %s55
      %p62 = scmp.eq.s32.totalorder %s24, 1
      %p63 = por %p61, %p62
      %p64 = scmp.ne.s32.totalorder %s55, %s56
      %p65 = scmp.eq.s32.totalorder %s24, 0
      %p66 = por %p64, %p65
      %p67 = scmp.ne.s32.totalorder %s55, %s56
      %p68 = scmp.eq.s32.totalorder %s25, 1
      %p69 = por %p67, %p68
      %p71 = scmp.ne.s32.totalorder %s56, %s70
      %p72 = scmp.eq.s32.totalorder %s25, 0
      %p73 = por %p71, %p72
      %s75 = sadd.s32 %s74, 1
      %p78 = scmp.eq.s32.totalorder %s19, 1
      %p79 = scmp.ne.s32.totalorder %s74, %s76
      %p80 = scmp.eq.s32.totalorder %s19, 0
      %p81 = por %p79, %p80
      %p82 = scmp.ne.s32.totalorder %s74, %s76
      %p83 = scmp.eq.s32.totalorder %s24, 1
      %p84 = por %p82, %p83
      %p85 = scmp.ne.s32.totalorder %s76, %s77
      %p86 = scmp.eq.s32.totalorder %s24, 0
      %p87 = por %p85, %p86
      %p88 = scmp.ne.s32.totalorder %s76, %s77
      %p89 = scmp.eq.s32.totalorder %s25, 1
      %p90 = por %p88, %p89
      %p92 = scmp.ne.s32.totalorder %s77, %s91
      %p93 = scmp.eq.s32.totalorder %s25, 0
      %p94 = por %p92, %p93
      %s96 = sadd.s32 %s95, 1
      %p99 = scmp.eq.s32.totalorder %s19, 1
      %p100 = scmp.ne.s32.totalorder %s95, %s97
      %p101 = scmp.eq.s32.totalorder %s19, 0
      %p102 = por %p100, %p101
      %p103 = scmp.ne.s32.totalorder %s95, %s97
      %p104 = scmp.eq.s32.totalorder %s24, 1
      %p105 = por %p103, %p104
      %p106 = scmp.ne.s32.totalorder %s97, %s98
      %p107 = scmp.eq.s32.totalorder %s24, 0
      %p108 = por %p106, %p107
      %p109 = scmp.ne.s32.totalorder %s97, %s98
      %p110 = scmp.eq.s32.totalorder %s25, 1
      %p111 = por %p109, %p110
      %p113 = scmp.ne.s32.totalorder %s98, %s112
      %p114 = scmp.eq.s32.totalorder %s25, 0
      %p115 = por %p113, %p114
      %s117 = sadd.s32 %s116, 1
      %p120 = scmp.eq.s32.totalorder %s19, 1
      %p121 = scmp.ne.s32.totalorder %s116, %s118
      %p122 = scmp.eq.s32.totalorder %s19, 0
      %p123 = por %p121, %p122
      %p124 = scmp.ne.s32.totalorder %s116, %s118
      %p125 = scmp.eq.s32.totalorder %s24, 1
      %p126 = por %p124, %p125
      %p127 = scmp.ne.s32.totalorder %s118, %s119
      %p128 = scmp.eq.s32.totalorder %s24, 0
      %p129 = por %p127, %p128
      %p130 = scmp.ne.s32.totalorder %s118, %s119
      %p131 = scmp.eq.s32.totalorder %s25, 1
      %p132 = por %p130, %p131
      %p134 = scmp.ne.s32.totalorder %s119, %s133
      %p135 = scmp.eq.s32.totalorder %s25, 0
      %p136 = por %p134, %p135
      %s137 = ssub.s32 %s19, %s26
      %p138 = scmp.eq.s32.totalorder %s137, 0
      %s140 = sadd.s32 %s139, 1
      %s141 = scalar_select %p138, %s139, %s140
      %p144 = pneg %p138
      %p145 = scmp.eq.s32.totalorder %s19, 1
      %p146 = por %p144, %p145
      %p147 = scmp.ne.s32.totalorder %s139, %s142
      %p148 = scmp.eq.s32.totalorder %s19, 0
      %p149 = por %p147, %p148
      %p150 = scmp.ne.s32.totalorder %s139, %s142
      %p151 = scmp.eq.s32.totalorder %s24, 1
      %p152 = por %p150, %p151
      %p153 = scmp.ne.s32.totalorder %s142, %s143
      %p154 = scmp.eq.s32.totalorder %s24, 0
      %p155 = por %p153, %p154
      %p156 = scmp.ne.s32.totalorder %s142, %s143
      %p157 = scmp.eq.s32.totalorder %s25, 1
      %p158 = por %p156, %p157
      %p160 = scmp.ne.s32.totalorder %s143, %s159
      %p161 = scmp.eq.s32.totalorder %s25, 0
      %p162 = por %p160, %p161
      %p163 = scmp.le.s32.totalorder 1, %s19
      %p164 = scmp.lt.s32.totalorder %s19, 3
      %p165 = pnand %p163, %p164
      %p166 = pneg %p165
      // Predicated region
      $region9: #{tpu_custom_call.1} parent=5 // pred_check
        _
      $region10: #{tpu_custom_call.1} parent=5 // pred_check_branch
        %168 = sbr.rel (%p165) target = $region12
      $region11: #{tpu_custom_call.1} parent=5 // pred_region
        %s169 = ssub.s32 %s19, 1
        // Predicated region
        $region13: #{tpu_custom_call.1} parent=11 // pred_check
          %p170 = pneg %p66
        $region14: #{tpu_custom_call.1} parent=11 // pred_check_branch
          %172 = sbr.rel (%p170) target = $region16
        $region15: #{tpu_custom_call.1} parent=11 // pred_region
          %174 = vsyncadd [#allocation6], 0
          %s175 = sshll.u32 %s1, 4
          %s176 = int_to_ptr.hbm [resolvable:$true] %s175
          %s177 = sshll.u32 [#allocation5], 4
          %s178 = int_to_ptr.vmem [resolvable:$true] %s177
          %183 = dma.hbm_to_vmem [thread:$0]  %s176, 4096, %s178, [#allocation6], 128, 128, 8
        $region16: #{tpu_custom_call.1} parent=11 // pred_fallthru
          _
        // Predicated region
        $region17: #{tpu_custom_call.1} parent=11 // pred_check
          %p184 = pneg %p87
        $region18: #{tpu_custom_call.1} parent=11 // pred_check_branch
          %186 = sbr.rel (%p184) target = $region20
        $region19: #{tpu_custom_call.1} parent=11 // pred_region
          %188 = vsyncadd [#allocation6], 0
          %s190 = sshll.u32 %s2, 4
          %s191 = int_to_ptr.hbm [resolvable:$true] %s190
          %s192 = sshll.u32 [#allocation7], 4
          %s193 = int_to_ptr.vmem [resolvable:$true] %s192
          %195 = dma.hbm_to_vmem [thread:$0]  %s191, 32, %s193, [#allocation6]
        $region20: #{tpu_custom_call.1} parent=11 // pred_fallthru
          _
        // Predicated region
        $region21: #{tpu_custom_call.1} parent=11 // pred_check
          %p196 = pneg %p108
        $region22: #{tpu_custom_call.1} parent=11 // pred_check_branch
          %198 = sbr.rel (%p196) target = $region24
        $region23: #{tpu_custom_call.1} parent=11 // pred_region
          _
        $region24: #{tpu_custom_call.1} parent=11 // pred_fallthru
          _
        // Predicated region
        $region25: #{tpu_custom_call.1} parent=11 // pred_check
          %p199 = pneg %p129
        $region26: #{tpu_custom_call.1} parent=11 // pred_check_branch
          %201 = sbr.rel (%p199) target = $region28
        $region27: #{tpu_custom_call.1} parent=11 // pred_region
          %203 = vsyncadd [#allocation9], 0
          %s205 = sshll.u32 %s4, 4
          %s206 = int_to_ptr.hbm [resolvable:$true] %s205
          %s207 = sshll.u32 [#allocation8], 4
          %s208 = int_to_ptr.vmem [resolvable:$true] %s207
          %210 = dma.hbm_to_vmem [thread:$0]  %s206, 32, %s208, [#allocation9]
        $region28: #{tpu_custom_call.1} parent=11 // pred_fallthru
          _
      $region12: #{tpu_custom_call.1} parent=5 // pred_fallthru
        _
      %p211 = scmp.lt.s32.totalorder %s19, 2
      // Predicated region
      $region29: #{tpu_custom_call.1} parent=5 // pred_check
        %p212 = pneg %p211
      $region30: #{tpu_custom_call.1} parent=5 // pred_check_branch
        %214 = sbr.rel (%p212) target = $region32
      $region31: #{tpu_custom_call.1} parent=5 // pred_region
        // Predicated region
        $region33: #{tpu_custom_call.1} parent=31 // pred_check
          %p215 = pneg %p39
        $region34: #{tpu_custom_call.1} parent=31 // pred_check_branch
          %217 = sbr.rel (%p215) target = $region36
        $region35: #{tpu_custom_call.1} parent=31 // pred_region
          %s218 = sand.u32 %s29, 1
          %s219 = scalar_lea.sflag [#allocation3], %s218
          %s220 = sand.u32 %s29, 1
          %s221 = smul.addr %s220, 16
          %s222 = scalar_lea.vmem [#allocation2], %s221
          %224 = vsyncadd %s219, 0
          %s225 = smul.addr %s19, 2
          %s226 = smul.addr %s225, 8
          %s227 = scalar_lea.hbm %s0, %s226
          %s229 = sshll.u32 %s227, 4
          %s230 = int_to_ptr.hbm [resolvable:$true] %s229
          %s231 = sshll.u32 %s222, 4
          %s232 = int_to_ptr.vmem [resolvable:$true] %s231
          %234 = dma.hbm_to_vmem [thread:$0]  %s230, 256, %s232, %s219
        $region36: #{tpu_custom_call.1} parent=31 // pred_fallthru
          _
      $region32: #{tpu_custom_call.1} parent=5 // pred_fallthru
        _
      %p235 = scmp.le.s32.totalorder 1, %s19
      %p236 = scmp.lt.s32.totalorder %s19, 3
      %p237 = pnand %p235, %p236
      %p238 = pneg %p237
      // Predicated region
      $region37: #{tpu_custom_call.1} parent=5 // pred_check
        _
      $region38: #{tpu_custom_call.1} parent=5 // pred_check_branch
        %240 = sbr.rel (%p237) target = $region40
      $region39: #{tpu_custom_call.1} parent=5 // pred_region
        %s241 = ssub.s32 %s19, 1
        %s242 = sand.u32 %s32, 1
        %s243 = scalar_lea.sflag [#allocation3], %s242
        %s244 = sand.u32 %s32, 1
        %s245 = smul.addr %s244, 16
        %s246 = scalar_lea.vmem [#allocation2], %s245
        // Predicated region
        $region41: #{tpu_custom_call.1} parent=39 // pred_check
          %p247 = pneg %p45
        $region42: #{tpu_custom_call.1} parent=39 // pred_check_branch
          %249 = sbr.rel (%p247) target = $region44
        $region43: #{tpu_custom_call.1} parent=39 // pred_region
          %251 = dma.done %s243, 256
        $region44: #{tpu_custom_call.1} parent=39 // pred_fallthru
          _
        // Predicated region
        $region45: #{tpu_custom_call.1} parent=39 // pred_check
          %p252 = pneg %p66
        $region46: #{tpu_custom_call.1} parent=39 // pred_check_branch
          %254 = sbr.rel (%p252) target = $region48
        $region47: #{tpu_custom_call.1} parent=39 // pred_region
          %256 = dma.done [#allocation6], 4096
        $region48: #{tpu_custom_call.1} parent=39 // pred_fallthru
          _
        // Predicated region
        $region49: #{tpu_custom_call.1} parent=39 // pred_check
          %p257 = pneg %p87
        $region50: #{tpu_custom_call.1} parent=39 // pred_check_branch
          %259 = sbr.rel (%p257) target = $region52
        $region51: #{tpu_custom_call.1} parent=39 // pred_region
          %261 = dma.done [#allocation6], 32
        $region52: #{tpu_custom_call.1} parent=39 // pred_fallthru
          _
        // Predicated region
        $region53: #{tpu_custom_call.1} parent=39 // pred_check
          %p262 = pneg %p129
        $region54: #{tpu_custom_call.1} parent=39 // pred_check_branch
          %264 = sbr.rel (%p262) target = $region56
        $region55: #{tpu_custom_call.1} parent=39 // pred_region
          %266 = dma.done [#allocation9], 32
        $region56: #{tpu_custom_call.1} parent=39 // pred_fallthru
          _
        %s267 = sand.u32 %s32, 1
        %s268 = scalar_lea.sflag [#allocation3], %s267
        %s269 = sand.u32 %s32, 1
        %s270 = smul.addr %s269, 16
        %s271 = scalar_lea.vmem [#allocation2], %s270
        %p272 = pneg %p45
        %p273 = pneg %p42
        %p274 = pneg %p66
        %p275 = pneg %p63
        %p276 = pneg %p87
        %p277 = pneg %p84
        %p278 = pneg %p108
        %p279 = pneg %p105
        %p280 = pneg %p129
        %p281 = pneg %p126
        %p282 = pneg %p155
        %p283 = pneg %p152
        %s284 = sand.u32 %s142, 1
        %s285 = scalar_lea.sflag [#allocation4], %s284
        %s286 = sand.u32 %s142, 1
        %s287 = smul.addr %s286, 16
        %s288 = scalar_lea.vmem [#allocation10], %s287
        %v289 = vld [vmem:[%s246] sm:$0xff]
        %v290 = vld [vmem:[%s246 + $0x8] sm:$0xff]
        %v291 = vpack.c.bf16 %v289, %v289
        %v292 = vpack.c.bf16 %v290, %v290
        %v293 = vld [vmem:[#allocation5] sm:$0xff]
        %v294 = vld [vmem:[#allocation5 + $0x8] sm:$0xff]
        %v295 = vld [vmem:[#allocation5 + $0x10] sm:$0xff]
        %v296 = vld [vmem:[#allocation5 + $0x18] sm:$0xff]
        %v297 = vld [vmem:[#allocation5 + $0x20] sm:$0xff]
        %v298 = vld [vmem:[#allocation5 + $0x28] sm:$0xff]
        %v299 = vld [vmem:[#allocation5 + $0x30] sm:$0xff]
        %v300 = vld [vmem:[#allocation5 + $0x38] sm:$0xff]
        %v301 = vld [vmem:[#allocation5 + $0x40] sm:$0xff]
        %v302 = vld [vmem:[#allocation5 + $0x48] sm:$0xff]
        %v303 = vld [vmem:[#allocation5 + $0x50] sm:$0xff]
        %v304 = vld [vmem:[#allocation5 + $0x58] sm:$0xff]
        %v305 = vld [vmem:[#allocation5 + $0x60] sm:$0xff]
        %v306 = vld [vmem:[#allocation5 + $0x68] sm:$0xff]
        %v307 = vld [vmem:[#allocation5 + $0x70] sm:$0xff]
        %v308 = vld [vmem:[#allocation5 + $0x78] sm:$0xff]
        %v309 = vld [vmem:[#allocation5 + $0x80] sm:$0xff]
        %v310 = vld [vmem:[#allocation5 + $0x88] sm:$0xff]
        %v311 = vld [vmem:[#allocation5 + $0x90] sm:$0xff]
        %v312 = vld [vmem:[#allocation5 + $0x98] sm:$0xff]
        %v313 = vld [vmem:[#allocation5 + $0xa0] sm:$0xff]
        %v314 = vld [vmem:[#allocation5 + $0xa8] sm:$0xff]
        %v315 = vld [vmem:[#allocation5 + $0xb0] sm:$0xff]
        %v316 = vld [vmem:[#allocation5 + $0xb8] sm:$0xff]
        %v317 = vld [vmem:[#allocation5 + $0xc0] sm:$0xff]
        %v318 = vld [vmem:[#allocation5 + $0xc8] sm:$0xff]
        %v319 = vld [vmem:[#allocation5 + $0xd0] sm:$0xff]
        %v320 = vld [vmem:[#allocation5 + $0xd8] sm:$0xff]
        %v321 = vld [vmem:[#allocation5 + $0xe0] sm:$0xff]
        %v322 = vld [vmem:[#allocation5 + $0xe8] sm:$0xff]
        %v323 = vld [vmem:[#allocation5 + $0xf0] sm:$0xff]
        %v324 = vld [vmem:[#allocation5 + $0xf8] sm:$0xff]
        %v325 = vld [vmem:[#allocation7] sm:$0x3]
        %v327 = vperm.slane %v325, 0
        %v328 = vperm.slane %v325, 1
        %v363 = vunpack.c.l.b16 %v293
        %v364 = vunpack.c.h.b16 %v293
        %v365 = vunpack.c.l.b16 %v294
        %v366 = vunpack.c.h.b16 %v294
        %v367 = vunpack.c.l.b16 %v295
        %v368 = vunpack.c.h.b16 %v295
        %v369 = vunpack.c.l.b16 %v296
        %v370 = vunpack.c.h.b16 %v296
        %v371 = vunpack.c.l.b16 %v297
        %v372 = vunpack.c.h.b16 %v297
        %v373 = vunpack.c.l.b16 %v298
        %v374 = vunpack.c.h.b16 %v298
        %v375 = vunpack.c.l.b16 %v299
        %v376 = vunpack.c.h.b16 %v299
        %v377 = vunpack.c.l.b16 %v300
        %v378 = vunpack.c.h.b16 %v300
        %v379 = vunpack.c.l.b16 %v301
        %v380 = vunpack.c.h.b16 %v301
        %v381 = vunpack.c.l.b16 %v302
        %v382 = vunpack.c.h.b16 %v302
        %v383 = vunpack.c.l.b16 %v303
        %v384 = vunpack.c.h.b16 %v303
        %v385 = vunpack.c.l.b16 %v304
        %v386 = vunpack.c.h.b16 %v304
        %v387 = vunpack.c.l.b16 %v305
        %v388 = vunpack.c.h.b16 %v305
        %v389 = vunpack.c.l.b16 %v306
        %v390 = vunpack.c.h.b16 %v306
        %v391 = vunpack.c.l.b16 %v307
        %v392 = vunpack.c.h.b16 %v307
        %v393 = vunpack.c.l.b16 %v308
        %v394 = vunpack.c.h.b16 %v308
        %v395 = vunpack.c.l.b16 %v309
        %v396 = vunpack.c.h.b16 %v309
        %v397 = vunpack.c.l.b16 %v310
        %v398 = vunpack.c.h.b16 %v310
        %v399 = vunpack.c.l.b16 %v311
        %v400 = vunpack.c.h.b16 %v311
        %v401 = vunpack.c.l.b16 %v312
        %v402 = vunpack.c.h.b16 %v312
        %v403 = vunpack.c.l.b16 %v313
        %v404 = vunpack.c.h.b16 %v313
        %v405 = vunpack.c.l.b16 %v314
        %v406 = vunpack.c.h.b16 %v314
        %v407 = vunpack.c.l.b16 %v315
        %v408 = vunpack.c.h.b16 %v315
        %v409 = vunpack.c.l.b16 %v316
        %v410 = vunpack.c.h.b16 %v316
        %v411 = vunpack.c.l.b16 %v317
        %v412 = vunpack.c.h.b16 %v317
        %v413 = vunpack.c.l.b16 %v318
        %v414 = vunpack.c.h.b16 %v318
        %v415 = vunpack.c.l.b16 %v319
        %v416 = vunpack.c.h.b16 %v319
        %v417 = vunpack.c.l.b16 %v320
        %v418 = vunpack.c.h.b16 %v320
        %v419 = vunpack.c.l.b16 %v321
        %v420 = vunpack.c.h.b16 %v321
        %v421 = vunpack.c.l.b16 %v322
        %v422 = vunpack.c.h.b16 %v322
        %v423 = vunpack.c.l.b16 %v323
        %v424 = vunpack.c.h.b16 %v323
        %v425 = vunpack.c.l.b16 %v324
        %v426 = vunpack.c.h.b16 %v324
        %v427 = vpack.c.b16 %v365, %v363
        %v428 = vpack.c.b16 %v366, %v364
        %v429 = vpack.c.b16 %v369, %v367
        %v430 = vpack.c.b16 %v370, %v368
        %v431 = vpack.c.b16 %v373, %v371
        %v432 = vpack.c.b16 %v374, %v372
        %v433 = vpack.c.b16 %v377, %v375
        %v434 = vpack.c.b16 %v378, %v376
        %v435 = vpack.c.b16 %v381, %v379
        %v436 = vpack.c.b16 %v382, %v380
        %v437 = vpack.c.b16 %v385, %v383
        %v438 = vpack.c.b16 %v386, %v384
        %v439 = vpack.c.b16 %v389, %v387
        %v440 = vpack.c.b16 %v390, %v388
        %v441 = vpack.c.b16 %v393, %v391
        %v442 = vpack.c.b16 %v394, %v392
        %v443 = vpack.c.b16 %v397, %v395
        %v444 = vpack.c.b16 %v398, %v396
        %v445 = vpack.c.b16 %v401, %v399
        %v446 = vpack.c.b16 %v402, %v400
        %v447 = vpack.c.b16 %v405, %v403
        %v448 = vpack.c.b16 %v406, %v404
        %v449 = vpack.c.b16 %v409, %v407
        %v450 = vpack.c.b16 %v410, %v408
        %v451 = vpack.c.b16 %v413, %v411
        %v452 = vpack.c.b16 %v414, %v412
        %v453 = vpack.c.b16 %v417, %v415
        %v454 = vpack.c.b16 %v418, %v416
        %v455 = vpack.c.b16 %v421, %v419
        %v456 = vpack.c.b16 %v422, %v420
        %v457 = vpack.c.b16 %v425, %v423
        %v458 = vpack.c.b16 %v426, %v424
        %491 = vmatpush.bf16.msra.mxu0 %v441
        %492 = vmatpush.bf16.msra.mxu0 %v439
        %493 = vmatpush.bf16.msra.mxu0 %v437
        %494 = vmatpush.bf16.msra.mxu0 %v435
        %495 = vmatpush.bf16.msra.mxu0 %v433
        %496 = vmatpush.bf16.msra.mxu0 %v431
        %497 = vmatpush.bf16.msra.mxu0 %v429
        %498 = vmatpush.bf16.msra.mxu0 %v427
        %499 = vmatmul.bf16.gmra.mxu0 %v291
        %v500 = vpop.f32.mrf.mxu0
        %v501 = vadd.f32 %v327, %v500
        %v502 = vpop.f32.mrf.mxu0
        %503 = vdwg.mxu0
        %504 = vmatpush.bf16.msra.mxu0 %v457
        %505 = vmatpush.bf16.msra.mxu0 %v455
        %506 = vmatpush.bf16.msra.mxu0 %v453
        %507 = vmatpush.bf16.msra.mxu0 %v451
        %508 = vmatpush.bf16.msra.mxu0 %v449
        %509 = vmatpush.bf16.msra.mxu0 %v447
        %510 = vmatpush.bf16.msra.mxu0 %v445
        %511 = vmatpush.bf16.msra.mxu0 %v443
        %512 = vmatmul.bf16.gmra.mxu0 %v292
        %v513 = vpop.f32.mrf.mxu0
        %v514 = vadd.f32 %v501, %v513
        %v515 = vpop.f32.mrf.mxu0
        %516 = vdwg.mxu0
        %517 = vmatpush.bf16.msra.mxu0 %v442
        %518 = vmatpush.bf16.msra.mxu0 %v440
        %519 = vmatpush.bf16.msra.mxu0 %v438
        %520 = vmatpush.bf16.msra.mxu0 %v436
        %521 = vmatpush.bf16.msra.mxu0 %v434
        %522 = vmatpush.bf16.msra.mxu0 %v432
        %523 = vmatpush.bf16.msra.mxu0 %v430
        %524 = vmatpush.bf16.msra.mxu0 %v428
        %525 = vmatmul.bf16.gmra.mxu0 %v291
        %v526 = vpop.f32.mrf.mxu0
        %v527 = vadd.f32 %v328, %v526
        %v528 = vpop.f32.mrf.mxu0
        %529 = vdwg.mxu0
        %530 = vmatpush.bf16.msra.mxu0 %v458
        %531 = vmatpush.bf16.msra.mxu0 %v456
        %532 = vmatpush.bf16.msra.mxu0 %v454
        %533 = vmatpush.bf16.msra.mxu0 %v452
        %534 = vmatpush.bf16.msra.mxu0 %v450
        %535 = vmatpush.bf16.msra.mxu0 %v448
        %536 = vmatpush.bf16.msra.mxu0 %v446
        %537 = vmatpush.bf16.msra.mxu0 %v444
        %538 = vmatmul.bf16.gmra.mxu0 %v292
        %v539 = vpop.f32.mrf.mxu0
        %v540 = vadd.f32 %v527, %v539
        %v541 = vpop.f32.mrf.mxu0
        %542 = vdwg.mxu0
        %v543 = vld [vmem:[%s3] sm:$0x3]
        %v544 = vld [vmem:[#allocation8] sm:$0x3]
        %v545 = vmul.f32 %v514, %v514
        %v546 = vmul.f32 %v540, %v540
        %v547 = vmul.f32 %v545, 0.044715
        %v548 = vmul.f32 %v546, 0.044715
        %v549 = vadd.f32 %v547, 1.0
        %v550 = vadd.f32 %v548, 1.0
        %v551 = vmul.f32 %v514, %v549
        %v552 = vmul.f32 %v540, %v550
        %v553 = vmul.f32 %v514, 0.5
        %v554 = vmul.f32 %v540, 0.5
        %v555 = vmul.f32 %v551, 0.7978846
        %v556 = vmul.f32 %v552, 0.7978846
        %v557 = vtanh.pop %v555
        %v558 = vtanh.pop %v556
        %v559 = vadd.f32 %v557, 1.0
        %v560 = vadd.f32 %v558, 1.0
        %v561 = vmul.f32 %v553, %v559
        %v562 = vmul.f32 %v554, %v560
        %v563 = vadd.f32 %v561, %v562
        %564 = vadd.xlane.f32.xlu0 %v563
        %v565 = vpop.xlane.xlu0 %564
        %v566 = vrcp.pop 256.0
        %v567 = vmul.f32 256.0, %v566
        %v568 = vsub.f32 1.0, %v567
        %v569 = vmul.f32 %v566, %v568
        %v570 = vadd.f32 %v566, %v569
        %vm571 = vweird.f32 %v566
        %v572 = vsel %vm571, %v566, %v570
        %v573 = vmul.f32 %v565, %v572
        %v574 = vmul.f32 %v561, %v561
        %v575 = vmul.f32 %v562, %v562
        %v576 = vadd.f32 %v574, %v575
        %577 = vadd.xlane.f32.xlu0 %v576
        %v578 = vpop.xlane.xlu0 %577
        %v579 = vmul.f32 %v578, %v572
        %v580 = vmul.f32 %v573, %v573
        %v581 = vsub.f32 %v579, %v580
        %v582 = vsub.f32 %v561, %v573
        %v583 = vsub.f32 %v562, %v573
        %v584 = vadd.f32 %v581, 1e-05
        %v585 = vrsqrt.pop %v584
        %v586 = vmul.f32 %v585, %v584
        %v587 = vmul.f32 %v586, %v585
        %v588 = vmul.f32 0.5, %v587
        %v589 = vsub.f32 1.5, %v588
        %v590 = vmul.f32 %v585, %v589
        %vm591 = vweird.f32 %v584
        %vm592 = vweird.f32 %v585
        %vm593 = vmor %vm591, %vm592
        %v594 = vsel %vm593, %v585, %v590
        %v595 = vmul.f32 %v582, %v594
        %v596 = vmul.f32 %v583, %v594
        %v598 = vperm.slane %v543, 0
        %v599 = vperm.slane %v543, 1
        %v602 = vmul.f32 %v595, %v598
        %v603 = vmul.f32 %v596, %v599
        %v605 = vperm.slane %v544, 0
        %v606 = vperm.slane %v544, 1
        %v609 = vadd.f32 %v602, %v605
        %v610 = vadd.f32 %v603, %v606
        %611 = vst [vmem:[%s288] sm:$0xff] %v609
        %612 = vst [vmem:[%s288 + $0x8] sm:$0xff] %v610
        %s613 = sand.u32 %s142, 1
        %s614 = scalar_lea.sflag [#allocation4], %s613
        %s615 = sand.u32 %s142, 1
        %s616 = smul.addr %s615, 16
        %s617 = scalar_lea.vmem [#allocation10], %s616
        // Predicated region
        $region57: #{tpu_custom_call.1} parent=39 // pred_check
          %p618 = pneg %p152
        $region58: #{tpu_custom_call.1} parent=39 // pred_check_branch
          %620 = sbr.rel (%p618) target = $region60
        $region59: #{tpu_custom_call.1} parent=39 // pred_region
          %622 = vsyncadd %s614, 0
          %s623 = smul.addr %s24, 2
          %s624 = smul.addr %s623, 8
          %s625 = scalar_lea.hbm %s5, %s624
          %s627 = sshll.u32 %s617, 4
          %s628 = int_to_ptr.vmem [resolvable:$true] %s627
          %s629 = sshll.u32 %s625, 4
          %s630 = int_to_ptr.hbm [resolvable:$true] %s629
          %632 = dma.vmem_to_hbm [thread:$0]  %s628, 256, %s630, %s614
        $region60: #{tpu_custom_call.1} parent=39 // pred_fallthru
          _
      $region40: #{tpu_custom_call.1} parent=5 // pred_fallthru
        _
      %p633 = scmp.le.s32.totalorder 2, %s19
      // Predicated region
      $region61: #{tpu_custom_call.1} parent=5 // pred_check
        %p634 = pneg %p633
      $region62: #{tpu_custom_call.1} parent=5 // pred_check_branch
        %636 = sbr.rel (%p634) target = $region64
      $region63: #{tpu_custom_call.1} parent=5 // pred_region
        %s637 = ssub.s32 %s19, 2
        // Predicated region
        $region65: #{tpu_custom_call.1} parent=63 // pred_check
          %p638 = pneg %p158
        $region66: #{tpu_custom_call.1} parent=63 // pred_check_branch
          %640 = sbr.rel (%p638) target = $region68
        $region67: #{tpu_custom_call.1} parent=63 // pred_region
          %s641 = sand.u32 %s143, 1
          %s642 = scalar_lea.sflag [#allocation4], %s641
          %s643 = sand.u32 %s143, 1
          %s644 = smul.addr %s643, 16
          %s645 = scalar_lea.vmem [#allocation10], %s644
          %647 = dma.done %s642, 256
        $region68: #{tpu_custom_call.1} parent=63 // pred_fallthru
          _
      $region64: #{tpu_custom_call.1} parent=5 // pred_fallthru
        _
    $region6: #{tpu_custom_call.1} parent=1 // loop_footer
      %s23 = sadd.s32 1, %s19
    $region7: #{tpu_custom_call.1} parent=1 // loop_footer_branch
      %18 = sbr.rel target = $region3
    $region8: #{tpu_custom_call.1} parent=1 // loop_exit
      _
    %648 = vsyncpa [#allocation3], 1
    %s649 = scalar_lea.sflag [#allocation3], 1
    %650 = vsyncpa %s649, 1
    %651 = vsyncpa [#allocation6], 1
    %652 = vsyncpa [#allocation9], 1
    %653 = vsyncpa [#allocation4], 1
    %s654 = scalar_lea.sflag [#allocation4], 1
    %655 = vsyncpa %s654, 1

</llo_original>
